<compile_context>
chip_gen: v6e
topology: v6e:2x2x1
jax: 0.10.0
libtpu: 0.0.40
codegen_flags: <defaults>
</compile_context>

<pallas_src>
import math
import functools

import jax
import jax.numpy as jnp
from jax import lax
from jax.experimental import pallas as pl
from jax.experimental.pallas import tpu as pltpu

VMEM_LIMIT = 32 * 1024 * 1024  # conservative (fits v5e/v6e/v7x scoped defaults)


def _layernorm(y, gamma, beta, eps=1e-5):
    mu = jnp.mean(y, axis=-1, keepdims=True)
    var = jnp.mean((y - mu) ** 2, axis=-1, keepdims=True)
    return (y - mu) * lax.rsqrt(var + eps) * gamma + beta


def _pick_tile(n, target=256):
    for cand in (target, 128, 64, 32, 16, 8):
        if cand <= n and n % cand == 0:
            return cand
    return n


# --------------------------------------------------------------------------------------
# Kernel 0: QKV projection (row-wise).  Q is pre-scaled by 1/sqrt(head_dim) via Wq.
# --------------------------------------------------------------------------------------
def qkv_kernel(x_ref, wq_ref, wk_ref, wv_ref, q_ref, k_ref, v_ref):
    x = x_ref[...].astype(jnp.bfloat16)                                   # (tm, k)
    q_ref[...] = jnp.dot(x, wq_ref[...],
                         preferred_element_type=jnp.float32).astype(q_ref.dtype)
    k_ref[...] = jnp.dot(x, wk_ref[...],
                         preferred_element_type=jnp.float32).astype(k_ref.dtype)
    v_ref[...] = jnp.dot(x, wv_ref[...],
                         preferred_element_type=jnp.float32).astype(v_ref.dtype)


# --------------------------------------------------------------------------------------
# Kernel A: flash-style multi-head self-attention over precomputed Q/K/V.
# Produces the pre-unify head concatenation (b, t, k) in bf16.
# --------------------------------------------------------------------------------------
def attention_kernel(q_ref, k_ref, v_ref, att_ref, m_sc, l_sc, acc_sc, *, heads):
    ki = pl.program_id(2)
    nk = pl.num_programs(2)
    k = q_ref.shape[2]
    s = k // heads

    @pl.when(ki == 0)
    def _():
        m_sc[...] = jnp.full_like(m_sc, -jnp.inf)
        l_sc[...] = jnp.zeros_like(l_sc)
        acc_sc[...] = jnp.zeros_like(acc_sc)

    q = q_ref[0]                                                          # (tq, k) bf16
    kmat = k_ref[0]                                                       # (tk, k) bf16
    vmat = v_ref[0]                                                       # (tk, k) bf16

    for h in range(heads):                                                # static unroll
        qh = q[:, h * s:(h + 1) * s]                                      # (tq, s)
        kh = kmat[:, h * s:(h + 1) * s]                                   # (tk, s)
        vh = vmat[:, h * s:(h + 1) * s]                                   # (tk, s)
        # scores[q, k'] = sum_d qh[q, d] * kh[k', d]  (NT matmul, no explicit transpose)
        scores = lax.dot_general(qh, kh, (((1,), (1,)), ((), ())),
                                 preferred_element_type=jnp.float32)      # (tq, tk) f32
        m_prev = m_sc[h]                                                  # (tq, 1)
        m_new = jnp.maximum(m_prev, jnp.max(scores, axis=-1, keepdims=True))
        alpha = jnp.exp(m_prev - m_new)
        p = jnp.exp(scores - m_new)                                       # (tq, tk) f32
        l_sc[h] = alpha * l_sc[h] + jnp.sum(p, axis=-1, keepdims=True)
        acc_sc[h] = alpha * acc_sc[h] + jnp.dot(p.astype(jnp.bfloat16), vh,
                                                preferred_element_type=jnp.float32)
        m_sc[h] = m_new

    @pl.when(ki == nk - 1)
    def _():
        outs = []
        for h in range(heads):
            inv = pl.reciprocal(l_sc[h], approx=True)                     # (tq, 1)
            outs.append(acc_sc[h] * inv)                                  # (tq, s)
        # single lane-dense (tq, k) store
        att_ref[0] = jnp.concatenate(outs, axis=-1).astype(att_ref.dtype)


# --------------------------------------------------------------------------------------
# Kernel B: unify-heads projection + residual + LayerNorm + FFN + residual + LayerNorm.
# Row-wise over the flattened (batch*time, k) matrix.
# --------------------------------------------------------------------------------------
def ffn_ln_kernel(att_ref, x_ref, wu_ref, bu_ref, g1_ref, b1n_ref,
                  w1_ref, b1_ref, w2_ref, b2_ref, g2_ref, b2n_ref, o_ref):
    x = x_ref[...]                                                        # (tm, k) f32
    attended = jnp.dot(att_ref[...], wu_ref[...],
                       preferred_element_type=jnp.float32) + bu_ref[...]
    x1 = _layernorm(attended + x, g1_ref[...], b1n_ref[...])              # f32
    h1 = jnp.maximum(
        jnp.dot(x1.astype(jnp.bfloat16), w1_ref[...],
                preferred_element_type=jnp.float32) + b1_ref[...], 0.0)
    ff = jnp.dot(h1.astype(jnp.bfloat16), w2_ref[...],
                 preferred_element_type=jnp.float32) + b2_ref[...]
    o_ref[...] = _layernorm(ff + x1, g2_ref[...], b2n_ref[...]).astype(o_ref.dtype)


# --------------------------------------------------------------------------------------
# Wrapper
# --------------------------------------------------------------------------------------
def transformer_block(x, params, heads, *, block_q=None, block_kv=None, block_m=None):
    b, t, k = x.shape
    assert k % heads == 0
    s = k // heads

    tq = block_q or _pick_tile(t)
    tk = block_kv or _pick_tile(t)
    assert t % tq == 0 and t % tk == 0

    tm = block_m or _pick_tile(b * t)
    assert (b * t) % tm == 0

    # Weights pre-cast once to bf16 (MXU operand dtype); the 1/sqrt(head_dim) scale is
    # folded into the query projection so the flash loop never multiplies by it.
    wq = (params['wq'] * (1.0 / math.sqrt(s))).astype(jnp.bfloat16)
    wk = params['wk'].astype(jnp.bfloat16)
    wv = params['wv'].astype(jnp.bfloat16)

    x2 = x.reshape(b * t, k)

    def _full_spec(arr, ngrid_args):
        nd = arr.ndim
        return pl.BlockSpec(arr.shape, lambda *a, _nd=nd: (0,) * _nd)

    # ---- Kernel 0: QKV projection over flattened rows ----
    q2, k2, v2 = pl.pallas_call(
        qkv_kernel,
        out_shape=(jax.ShapeDtypeStruct((b * t, k), jnp.bfloat16),
                   jax.ShapeDtypeStruct((b * t, k), jnp.bfloat16),
                   jax.ShapeDtypeStruct((b * t, k), jnp.bfloat16)),
        grid=((b * t) // tm,),
        in_specs=[pl.BlockSpec((tm, k), lambda i: (i, 0)),
                  _full_spec(wq, 1), _full_spec(wk, 1), _full_spec(wv, 1)],
        out_specs=[pl.BlockSpec((tm, k), lambda i: (i, 0)),
                   pl.BlockSpec((tm, k), lambda i: (i, 0)),
                   pl.BlockSpec((tm, k), lambda i: (i, 0))],
        compiler_params=pltpu.CompilerParams(
            dimension_semantics=("parallel",),
            vmem_limit_bytes=VMEM_LIMIT),
    )(x2, wq, wk, wv)

    qb = q2.reshape(b, t, k)
    kb = k2.reshape(b, t, k)
    vb = v2.reshape(b, t, k)

    # ---- Kernel A: flash attention ----
    att = pl.pallas_call(
        functools.partial(attention_kernel, heads=heads),
        out_shape=jax.ShapeDtypeStruct((b, t, k), jnp.bfloat16),
        grid=(b, t // tq, t // tk),
        in_specs=[
            pl.BlockSpec((1, tq, k), lambda bi, qi, ki: (bi, qi, 0)),   # query rows
            pl.BlockSpec((1, tk, k), lambda bi, qi, ki: (bi, ki, 0)),   # key rows
            pl.BlockSpec((1, tk, k), lambda bi, qi, ki: (bi, ki, 0)),   # value rows
        ],
        out_specs=pl.BlockSpec((1, tq, k), lambda bi, qi, ki: (bi, qi, 0)),
        scratch_shapes=[
            pltpu.VMEM((heads, tq, 1), jnp.float32),   # running max
            pltpu.VMEM((heads, tq, 1), jnp.float32),   # running denom
            pltpu.VMEM((heads, tq, s), jnp.float32),   # per-head output accumulator
        ],
        compiler_params=pltpu.CompilerParams(
            dimension_semantics=("parallel", "parallel", "arbitrary"),
            vmem_limit_bytes=VMEM_LIMIT),
    )(qb, kb, vb)

    # ---- Kernel B: unify + residual + LN + FFN + residual + LN, row-wise ----
    att2 = att.reshape(b * t, k)

    weights_b = [
        params['wu'].astype(jnp.bfloat16), params['bu'],
        params['g1'], params['b1n'],
        params['w1'].astype(jnp.bfloat16), params['b1'],
        params['w2'].astype(jnp.bfloat16), params['b2'],
        params['g2'], params['b2n'],
    ]

    out2 = pl.pallas_call(
        ffn_ln_kernel,
        out_shape=jax.ShapeDtypeStruct((b * t, k), x.dtype),
        grid=((b * t) // tm,),
        in_specs=[pl.BlockSpec((tm, k), lambda i: (i, 0)),
                  pl.BlockSpec((tm, k), lambda i: (i, 0))]
                 + [_full_spec(w, 1) for w in weights_b],
        out_specs=pl.BlockSpec((tm, k), lambda i: (i, 0)),
        compiler_params=pltpu.CompilerParams(
            dimension_semantics=("parallel",),
            vmem_limit_bytes=VMEM_LIMIT),
    )(att2, x2, *weights_b)

    return out2.reshape(b, t, k)


# --------------------------------------------------------------------------------------
# Pure-JAX reference (matches the PyTorch module forward, f32 everywhere)
# --------------------------------------------------------------------------------------
def reference_block(x, p, heads):
    b, t, k = x.shape
    s = k // heads
    q = x @ p['wq']
    kk = x @ p['wk']
    v = x @ p['wv']
    qr = q.reshape(b, t, heads, s)
    kr = kk.reshape(b, t, heads, s)
    vr = v.reshape(b, t, heads, s)
    scores = jnp.einsum('bqhd,bkhd->bhqk', qr, kr) / math.sqrt(s)
    pmat = jax.nn.softmax(scores, axis=-1)
    out = jnp.einsum('bhqk,bkhd->bqhd', pmat, vr).reshape(b, t, k)
    attended = out @ p['wu'] + p['bu']

    def ln(y, g, bt):
        mu = jnp.mean(y, axis=-1, keepdims=True)
        var = jnp.mean((y - mu) ** 2, axis=-1, keepdims=True)
        return (y - mu) * lax.rsqrt(var + 1e-5) * g + bt

    x1 = ln(attended + x, p['g1'], p['b1n'])
    h1 = jax.nn.relu(x1 @ p['w1'] + p['b1'])
    ff = h1 @ p['w2'] + p['b2']
    return ln(ff + x1, p['g2'], p['b2n'])


if __name__ == "__main__":
    B, T, K, HEADS = 2, 16, 32, 4

    key = jax.random.PRNGKey(0)
    ks = jax.random.split(key, 10)

    params = {
        'wq': 0.05 * jax.random.normal(ks[0], (K, K), jnp.float32),
        'wk': 0.05 * jax.random.normal(ks[1], (K, K), jnp.float32),
        'wv': 0.05 * jax.random.normal(ks[2], (K, K), jnp.float32),
        'wu': 0.05 * jax.random.normal(ks[3], (K, K), jnp.float32),
        'bu': 0.01 * jax.random.normal(ks[4], (1, K), jnp.float32),
        'g1': jnp.ones((1, K), jnp.float32),
        'b1n': jnp.zeros((1, K), jnp.float32),
        'w1': 0.05 * jax.random.normal(ks[5], (K, 4 * K), jnp.float32),
        'b1': 0.01 * jax.random.normal(ks[6], (1, 4 * K), jnp.float32),
        'w2': 0.05 * jax.random.normal(ks[7], (4 * K, K), jnp.float32),
        'b2': 0.01 * jax.random.normal(ks[8], (1, K), jnp.float32),
        'g2': jnp.ones((1, K), jnp.float32),
        'b2n': jnp.zeros((1, K), jnp.float32),
    }

    x = jax.random.normal(ks[9], (B, T, K), jnp.float32)

    # block_q/block_kv smaller than T so the online-softmax (flash) accumulation path
    # across multiple KV tiles is actually exercised.
    out = transformer_block(x, params, HEADS, block_q=8, block_kv=8)
    out = jax.block_until_ready(out)

    ref = reference_block(x, params, HEADS)
    assert jnp.allclose(out, ref, atol=2e-2, rtol=2e-2), \
        f"mismatch vs reference, max abs err = {jnp.max(jnp.abs(out - ref))}"

    print("KERNEL_OK")
</pallas_src>

<mosaic_0001>
module attributes {stable_mosaic.version = 11 : i64} {
  func.func @qkv_kernel(%arg0: i32, %arg1: memref<32x32xf32, #tpu.memory_space<vmem>>, %arg2: memref<32x32xbf16, #tpu.memory_space<vmem>>, %arg3: memref<32x32xbf16, #tpu.memory_space<vmem>>, %arg4: memref<32x32xbf16, #tpu.memory_space<vmem>>, %arg5: memref<32x32xbf16, #tpu.memory_space<vmem>>, %arg6: memref<32x32xbf16, #tpu.memory_space<vmem>>, %arg7: memref<32x32xbf16, #tpu.memory_space<vmem>>) attributes {dimension_semantics = [#tpu.dimension_semantics<parallel>], iteration_bounds = array<i64: 1>, scalar_prefetch = 0 : i64, scratch_operands = 0 : i64, tpu.core_type = #tpu.core_type<tc>, window_params = [{transform_indices = @transform_0, window_bounds = array<i64: 32, 32>}, {pipeline_mode = #tpu.pipeline_mode<synchronous>, transform_indices = @transform_1, window_bounds = array<i64: 32, 32>}, {pipeline_mode = #tpu.pipeline_mode<synchronous>, transform_indices = @transform_2, window_bounds = array<i64: 32, 32>}, {pipeline_mode = #tpu.pipeline_mode<synchronous>, transform_indices = @transform_3, window_bounds = array<i64: 32, 32>}, {transform_indices = @transform_4, window_bounds = array<i64: 32, 32>}, {transform_indices = @transform_5, window_bounds = array<i64: 32, 32>}, {transform_indices = @transform_6, window_bounds = array<i64: 32, 32>}]} {
    %c0 = arith.constant 0 : index
    %c0_0 = arith.constant 0 : index
    %0 = vector.load %arg1[%c0, %c0_0] : memref<32x32xf32, #tpu.memory_space<vmem>>, vector<32x32xf32>
    %1 = arith.truncf %0 : vector<32x32xf32> to vector<32x32xbf16>
    %c0_1 = arith.constant 0 : index
    %c0_2 = arith.constant 0 : index
    %2 = vector.load %arg2[%c0_1, %c0_2] : memref<32x32xbf16, #tpu.memory_space<vmem>>, vector<32x32xbf16>
    %cst = arith.constant dense<0.000000e+00> : vector<32x32xf32>
    %3 = tpu.matmul %1, %2, %cst {dimension_numbers = #tpu.dot_dimension_numbers<[1], [0], [0], [1], [0, 0, 1, 1], [], []>} : vector<32x32xbf16>, vector<32x32xbf16>, vector<32x32xf32> -> vector<32x32xf32>
    %4 = arith.truncf %3 : vector<32x32xf32> to vector<32x32xbf16>
    %c0_3 = arith.constant 0 : index
    %c0_4 = arith.constant 0 : index
    %5 = vector.load %arg5[%c0_3, %c0_4] : memref<32x32xbf16, #tpu.memory_space<vmem>>, vector<32x32xbf16>
    tpu.vector_store %arg5[%c0_3, %c0_4], %4 {strides = array<i32>} : memref<32x32xbf16, #tpu.memory_space<vmem>>, vector<32x32xbf16>,
    %c0_5 = arith.constant 0 : index
    %c0_6 = arith.constant 0 : index
    %6 = vector.load %arg3[%c0_5, %c0_6] : memref<32x32xbf16, #tpu.memory_space<vmem>>, vector<32x32xbf16>
    %cst_7 = arith.constant dense<0.000000e+00> : vector<32x32xf32>
    %7 = tpu.matmul %1, %6, %cst_7 {dimension_numbers = #tpu.dot_dimension_numbers<[1], [0], [0], [1], [0, 0, 1, 1], [], []>} : vector<32x32xbf16>, vector<32x32xbf16>, vector<32x32xf32> -> vector<32x32xf32>
    %8 = arith.truncf %7 : vector<32x32xf32> to vector<32x32xbf16>
    %c0_8 = arith.constant 0 : index
    %c0_9 = arith.constant 0 : index
    %9 = vector.load %arg6[%c0_8, %c0_9] : memref<32x32xbf16, #tpu.memory_space<vmem>>, vector<32x32xbf16>
    tpu.vector_store %arg6[%c0_8, %c0_9], %8 {strides = array<i32>} : memref<32x32xbf16, #tpu.memory_space<vmem>>, vector<32x32xbf16>,
    %c0_10 = arith.constant 0 : index
    %c0_11 = arith.constant 0 : index
    %10 = vector.load %arg4[%c0_10, %c0_11] : memref<32x32xbf16, #tpu.memory_space<vmem>>, vector<32x32xbf16>
    %cst_12 = arith.constant dense<0.000000e+00> : vector<32x32xf32>
    %11 = tpu.matmul %1, %10, %cst_12 {dimension_numbers = #tpu.dot_dimension_numbers<[1], [0], [0], [1], [0, 0, 1, 1], [], []>} : vector<32x32xbf16>, vector<32x32xbf16>, vector<32x32xf32> -> vector<32x32xf32>
    %12 = arith.truncf %11 : vector<32x32xf32> to vector<32x32xbf16>
    %c0_13 = arith.constant 0 : index
    %c0_14 = arith.constant 0 : index
    %13 = vector.load %arg7[%c0_13, %c0_14] : memref<32x32xbf16, #tpu.memory_space<vmem>>, vector<32x32xbf16>
    tpu.vector_store %arg7[%c0_13, %c0_14], %12 {strides = array<i32>} : memref<32x32xbf16, #tpu.memory_space<vmem>>, vector<32x32xbf16>,
    return
  }
  func.func @transform_0(%arg0: i32) -> (i32, i32) {
    %c0_i32 = arith.constant 0 : i32
    %c0_i32_0 = arith.constant 0 : i32
    return %arg0, %c0_i32 : i32, i32
  }
  func.func @transform_1(%arg0: i32) -> (i32, i32) {
    %c0_i32 = arith.constant 0 : i32
    %c0_i32_0 = arith.constant 0 : i32
    %c0_i32_1 = arith.constant 0 : i32
    return %c0_i32, %c0_i32_0 : i32, i32
  }
  func.func @transform_2(%arg0: i32) -> (i32, i32) {
    %c0_i32 = arith.constant 0 : i32
    %c0_i32_0 = arith.constant 0 : i32
    %c0_i32_1 = arith.constant 0 : i32
    return %c0_i32, %c0_i32_0 : i32, i32
  }
  func.func @transform_3(%arg0: i32) -> (i32, i32) {
    %c0_i32 = arith.constant 0 : i32
    %c0_i32_0 = arith.constant 0 : i32
    %c0_i32_1 = arith.constant 0 : i32
    return %c0_i32, %c0_i32_0 : i32, i32
  }
  func.func @transform_4(%arg0: i32) -> (i32, i32) {
    %c0_i32 = arith.constant 0 : i32
    %c0_i32_0 = arith.constant 0 : i32
    return %arg0, %c0_i32 : i32, i32
  }
  func.func @transform_5(%arg0: i32) -> (i32, i32) {
    %c0_i32 = arith.constant 0 : i32
    %c0_i32_0 = arith.constant 0 : i32
    return %arg0, %c0_i32 : i32, i32
  }
  func.func @transform_6(%arg0: i32) -> (i32, i32) {
    %c0_i32 = arith.constant 0 : i32
    %c0_i32_0 = arith.constant 0 : i32
    return %arg0, %c0_i32 : i32, i32
  }
}

</mosaic_0001>

<llo_original>
// kernel: tpu_custom_call.1
$region0: #{tpu_custom_call.1}
  #allocation0 [shape = 'u32[]', space=smem, size = 0x4, offset = 0x4, fixed_abs, tag = 'smem constant byte address 0x4 - core index']
  #allocation1 [shape = 'u32[144,128]{1,0:T(1,128)}', space=vmem, size = 0x12000, scoped, tag = 'internal scratch']
  %s0 = inlined_call_operand.hbm [shape: f32[32,32], index: 0, kind: input, shape index: {}]
  %s1 = inlined_call_operand.hbm [shape: bf16[32,32], index: 1, kind: input, shape index: {}]
  %s2 = inlined_call_operand.hbm [shape: bf16[32,32], index: 2, kind: input, shape index: {}]
  %s3 = inlined_call_operand.hbm [shape: bf16[32,32], index: 3, kind: input, shape index: {}]
  %s4 = inlined_call_operand.hbm [shape: bf16[32,32], index: 4, kind: output, shape index: {0}]
  %s5 = inlined_call_operand.hbm [shape: bf16[32,32], index: 5, kind: output, shape index: {1}]
  %s6 = inlined_call_operand.hbm [shape: bf16[32,32], index: 6, kind: output, shape index: {2}]
  %7 = xla_tuple %s4, %s5, %s6
  %s8 = sld [smem:[#allocation0]]
  $region58: #{tpu_custom_call.1} parent=0
    _
  %s10 = ssub.s32 1, %s8
  %s11 = scalar_select 0, %s10, %s8
  $region1: #{tpu_custom_call.1} parent=0
    #allocation2 [shape = 'u8[16384]{0}', space=vmem, size = 0x4000, scoped, tag = 'input window, operand 0, single buffered']
    #allocation3 [shape = 's32[1]{0}', space=sflag, size = 0x4, scoped, tag = 'scoped memory for tpu_custom_call.1']
    #allocation4 [shape = 's32[1]{0}', space=sflag, size = 0x4, scoped, tag = 'scoped memory for tpu_custom_call.1']
    #allocation5 [shape = 'u8[8192]{0}', space=vmem, size = 0x2000, scoped, tag = 'input window, operand 1, single buffered']
    #allocation6 [shape = 's32[1]{0}', space=sflag, size = 0x4, scoped, tag = 'scoped memory for tpu_custom_call.1']
    #allocation7 [shape = 'u8[8192]{0}', space=vmem, size = 0x2000, scoped, tag = 'input window, operand 2, single buffered']
    #allocation8 [shape = 'u8[8192]{0}', space=vmem, size = 0x2000, scoped, tag = 'input window, operand 3, single buffered']
    #allocation9 [shape = 's32[1]{0}', space=sflag, size = 0x4, scoped, tag = 'scoped memory for tpu_custom_call.1']
    #allocation10 [shape = 'u8[8192]{0}', space=vmem, size = 0x2000, scoped, tag = 'output window, operand 0, single buffered']
    #allocation11 [shape = 'u8[8192]{0}', space=vmem, size = 0x2000, scoped, tag = 'output window, operand 1, single buffered']
    #allocation12 [shape = 's32[1]{0}', space=sflag, size = 0x4, scoped, tag = 'scoped memory for tpu_custom_call.1']
    #allocation13 [shape = 'u8[8192]{0}', space=vmem, size = 0x2000, scoped, tag = 'output window, operand 2, single buffered']
    %12 = vsyncpa [#allocation3], 0
    %13 = vsyncpa [#allocation6], 0
    %14 = vsyncpa [#allocation9], 0
    %15 = vsyncpa [#allocation4], 0
    %16 = vsyncpa [#allocation12], 0
    // Predicated region
    $region2: #{tpu_custom_call.1} parent=1 // pred_check
      _
    $region3: #{tpu_custom_call.1} parent=1 // pred_check_branch
      %18 = sbr.rel (0) target = $region5
    $region4: #{tpu_custom_call.1} parent=1 // pred_region
      %s20 = ssub.s32 512, 512
      %21 = vsyncadd [#allocation3], %s20
      %s22 = sshll.u32 [#allocation2], 4
      %s23 = int_to_ptr.vmem [resolvable:$true] %s22
      %28 = dma.hbm_to_vmem [thread:$0]  %s0, 512, %s23, [#allocation3], 128, 128, 8
    $region5: #{tpu_custom_call.1} parent=1 // pred_fallthru
      _
    // Predicated region
    $region6: #{tpu_custom_call.1} parent=1 // pred_check
      _
    $region7: #{tpu_custom_call.1} parent=1 // pred_check_branch
      %30 = sbr.rel (0) target = $region9
    $region8: #{tpu_custom_call.1} parent=1 // pred_region
      %s32 = ssub.s32 256, 256
      %33 = vsyncadd [#allocation6], %s32
      %s34 = sshll.u32 [#allocation5], 4
      %s35 = int_to_ptr.vmem [resolvable:$true] %s34
      %40 = dma.hbm_to_vmem [thread:$0]  %s1, 256, %s35, [#allocation6], 64, 64, 4
    $region9: #{tpu_custom_call.1} parent=1 // pred_fallthru
      _
    // Predicated region
    $region10: #{tpu_custom_call.1} parent=1 // pred_check
      _
    $region11: #{tpu_custom_call.1} parent=1 // pred_check_branch
      %42 = sbr.rel (0) target = $region13
    $region12: #{tpu_custom_call.1} parent=1 // pred_region
      %s44 = ssub.s32 256, 256
      %45 = vsyncadd [#allocation6], %s44
      %s46 = sshll.u32 [#allocation7], 4
      %s47 = int_to_ptr.vmem [resolvable:$true] %s46
      %52 = dma.hbm_to_vmem [thread:$0]  %s2, 256, %s47, [#allocation6], 64, 64, 4
    $region13: #{tpu_custom_call.1} parent=1 // pred_fallthru
      _
    // Predicated region
    $region14: #{tpu_custom_call.1} parent=1 // pred_check
      _
    $region15: #{tpu_custom_call.1} parent=1 // pred_check_branch
      %54 = sbr.rel (0) target = $region17
    $region16: #{tpu_custom_call.1} parent=1 // pred_region
      %s56 = ssub.s32 256, 256
      %57 = vsyncadd [#allocation9], %s56
      %s58 = sshll.u32 [#allocation8], 4
      %s59 = int_to_ptr.vmem [resolvable:$true] %s58
      %64 = dma.hbm_to_vmem [thread:$0]  %s3, 256, %s59, [#allocation9], 64, 64, 4
    $region17: #{tpu_custom_call.1} parent=1 // pred_fallthru
      _
    // Predicated region
    $region18: #{tpu_custom_call.1} parent=1 // pred_check
      _
    $region19: #{tpu_custom_call.1} parent=1 // pred_check_branch
      %66 = sbr.rel (0) target = $region21
    $region20: #{tpu_custom_call.1} parent=1 // pred_region
      %67 = dma.done [#allocation3], 512
    $region21: #{tpu_custom_call.1} parent=1 // pred_fallthru
      _
    // Predicated region
    $region22: #{tpu_custom_call.1} parent=1 // pred_check
      _
    $region23: #{tpu_custom_call.1} parent=1 // pred_check_branch
      %69 = sbr.rel (0) target = $region25
    $region24: #{tpu_custom_call.1} parent=1 // pred_region
      %70 = dma.done [#allocation6], 256
    $region25: #{tpu_custom_call.1} parent=1 // pred_fallthru
      _
    // Predicated region
    $region26: #{tpu_custom_call.1} parent=1 // pred_check
      _
    $region27: #{tpu_custom_call.1} parent=1 // pred_check_branch
      %72 = sbr.rel (0) target = $region29
    $region28: #{tpu_custom_call.1} parent=1 // pred_region
      %73 = dma.done [#allocation6], 256
    $region29: #{tpu_custom_call.1} parent=1 // pred_fallthru
      _
    // Predicated region
    $region30: #{tpu_custom_call.1} parent=1 // pred_check
      _
    $region31: #{tpu_custom_call.1} parent=1 // pred_check_branch
      %75 = sbr.rel (0) target = $region33
    $region32: #{tpu_custom_call.1} parent=1 // pred_region
      %76 = dma.done [#allocation9], 256
    $region33: #{tpu_custom_call.1} parent=1 // pred_fallthru
      _
    %v78 = vld [vmem:[#allocation2] sm:$0xff]
    %v79 = vld [vmem:[#allocation2 + $0x8] sm:$0xff]
    %v80 = vld [vmem:[#allocation2 + $0x10] sm:$0xff]
    %v81 = vld [vmem:[#allocation2 + $0x18] sm:$0xff]
    %v82 = vpack.c.bf16 %v79, %v78
    %v83 = vpack.c.bf16 %v81, %v80
    %v84 = vld [vmem:[#allocation5] sm:$0xf]
    %v85 = vld [vmem:[#allocation5 + $0x4] sm:$0xf]
    %v86 = vld [vmem:[#allocation5 + $0x8] sm:$0xf]
    %v87 = vld [vmem:[#allocation5 + $0xc] sm:$0xf]
    %v92 = vunpack.c.l.b16 %v84
    %v93 = vunpack.c.l.b16 %v85
    %v94 = vunpack.c.l.b16 %v86
    %v95 = vunpack.c.l.b16 %v87
    %v96 = vpack.c.b16 %v93, %v92
    %v97 = vpack.c.b16 %v95, %v94
    %vm100 = vcmask 261120
    %v102 = vsel %vm100, %v82, 0
    %v105 = vsel %vm100, %v83, 0
    %107 = vmatprep.subr.bf16.mxu0 0
    %108 = vmatpush1.bf16.msra.mxu0 0
    %109 = vmatprep.subr.bf16.mxu0 0
    %110 = vmatpush1.bf16.msra.mxu0 0
    %111 = vmatprep.subr.bf16.mxu0 0
    %112 = vmatpush1.bf16.msra.mxu0 0
    %113 = vmatprep.subr.bf16.mxu0 0
    %114 = vmatpush1.bf16.msra.mxu0 0
    %115 = vmatprep.subr.bf16.mxu0 0
    %116 = vmatpush1.bf16.msra.mxu0 0
    %117 = vmatprep.subr.bf16.mxu0 0
    %118 = vmatpush1.bf16.msra.mxu0 0
    %119 = vmatprep.subr.bf16.mxu0 0
    %120 = vmatpush1.bf16.msra.mxu0 %v97
    %121 = vmatprep.subr.bf16.mxu0 0
    %122 = vmatpush1.bf16.msra.mxu0 %v96
    %123 = vmatprep.subr.bf16.mxu0 0
    %124 = vmatpush2.bf16.msra.mxu0 0
    %125 = vmatprep.subr.bf16.mxu0 0
    %126 = vmatpush2.bf16.msra.mxu0 0
    %127 = vmatprep.subr.bf16.mxu0 0
    %128 = vmatpush2.bf16.msra.mxu0 0
    %129 = vmatprep.subr.bf16.mxu0 0
    %130 = vmatpush2.bf16.msra.mxu0 0
    %131 = vmatprep.subr.bf16.mxu0 0
    %132 = vmatpush2.bf16.msra.mxu0 0
    %133 = vmatprep.subr.bf16.mxu0 0
    %134 = vmatpush2.bf16.msra.mxu0 0
    %135 = vmatprep.subr.bf16.mxu0 0
    %136 = vmatpush2.bf16.msra.mxu0 0
    %137 = vmatprep.subr.bf16.mxu0 0
    %138 = vmatpush2.bf16.msra.mxu0 0
    %139 = vmatprep.mubr.bf16.mxu0 0
    %140 = vmatmul.mubr.bf16.gmra.mxu0 %v102
    %v141 = vpop.f32.mrf.mxu0
    %v142 = vadd.f32 0.0, %v141
    %v143 = vpop.f32.mrf.mxu0
    %v144 = vpop.f32.mrf.mxu0
    %v145 = vadd.f32 0.0, %v144
    %v146 = vpop.f32.mrf.mxu0
    %147 = vmatprep.mubr.bf16.mxu0 0
    %148 = vmatmul.mubr.bf16.gmra.mxu0 %v105
    %v149 = vpop.f32.mrf.mxu0
    %v150 = vadd.f32 0.0, %v149
    %v151 = vpop.f32.mrf.mxu0
    %v152 = vpop.f32.mrf.mxu0
    %v153 = vadd.f32 0.0, %v152
    %v154 = vpop.f32.mrf.mxu0
    %155 = vdwg.mxu0
    %v156 = vpack.c.bf16 %v145, %v142
    %v157 = vpack.c.bf16 %v153, %v150
    %v160 = vunpack.c.l.b16 %v156
    %v161 = vunpack.c.h.b16 %v156
    %v162 = vunpack.c.l.b16 %v157
    %v163 = vunpack.c.h.b16 %v157
    %v164 = vpack.c.b16 %v160, %v160
    %v165 = vpack.c.b16 %v161, %v161
    %v166 = vpack.c.b16 %v162, %v162
    %v167 = vpack.c.b16 %v163, %v163
    %vm172 = vcmask 257024
    %173 = vst.msk [vmem:[#allocation10] sm:$0xf] %vm172, %v164
    %174 = vst.msk [vmem:[#allocation10 + $0x4] sm:$0xf] %vm172, %v165
    %175 = vst.msk [vmem:[#allocation10 + $0x8] sm:$0xf] %vm172, %v166
    %176 = vst.msk [vmem:[#allocation10 + $0xc] sm:$0xf] %vm172, %v167
    %v177 = vld [vmem:[#allocation7] sm:$0xf]
    %v178 = vld [vmem:[#allocation7 + $0x4] sm:$0xf]
    %v179 = vld [vmem:[#allocation7 + $0x8] sm:$0xf]
    %v180 = vld [vmem:[#allocation7 + $0xc] sm:$0xf]
    %v185 = vunpack.c.l.b16 %v177
    %v186 = vunpack.c.l.b16 %v178
    %v187 = vunpack.c.l.b16 %v179
    %v188 = vunpack.c.l.b16 %v180
    %v189 = vpack.c.b16 %v186, %v185
    %v190 = vpack.c.b16 %v188, %v187
    %193 = vmatprep.subr.bf16.mxu0 0
    %194 = vmatpush1.bf16.msra.mxu0 0
    %195 = vmatprep.subr.bf16.mxu0 0
    %196 = vmatpush1.bf16.msra.mxu0 0
    %197 = vmatprep.subr.bf16.mxu0 0
    %198 = vmatpush1.bf16.msra.mxu0 0
    %199 = vmatprep.subr.bf16.mxu0 0
    %200 = vmatpush1.bf16.msra.mxu0 0
    %201 = vmatprep.subr.bf16.mxu0 0
    %202 = vmatpush1.bf16.msra.mxu0 0
    %203 = vmatprep.subr.bf16.mxu0 0
    %204 = vmatpush1.bf16.msra.mxu0 0
    %205 = vmatprep.subr.bf16.mxu0 0
    %206 = vmatpush1.bf16.msra.mxu0 %v190
    %207 = vmatprep.subr.bf16.mxu0 0
    %208 = vmatpush1.bf16.msra.mxu0 %v189
    %209 = vmatprep.subr.bf16.mxu0 0
    %210 = vmatpush2.bf16.msra.mxu0 0
    %211 = vmatprep.subr.bf16.mxu0 0
    %212 = vmatpush2.bf16.msra.mxu0 0
    %213 = vmatprep.subr.bf16.mxu0 0
    %214 = vmatpush2.bf16.msra.mxu0 0
    %215 = vmatprep.subr.bf16.mxu0 0
    %216 = vmatpush2.bf16.msra.mxu0 0
    %217 = vmatprep.subr.bf16.mxu0 0
    %218 = vmatpush2.bf16.msra.mxu0 0
    %219 = vmatprep.subr.bf16.mxu0 0
    %220 = vmatpush2.bf16.msra.mxu0 0
    %221 = vmatprep.subr.bf16.mxu0 0
    %222 = vmatpush2.bf16.msra.mxu0 0
    %223 = vmatprep.subr.bf16.mxu0 0
    %224 = vmatpush2.bf16.msra.mxu0 0
    %225 = vmatprep.mubr.bf16.mxu0 0
    %226 = vmatmul.mubr.bf16.gmra.mxu0 %v102
    %v227 = vpop.f32.mrf.mxu0
    %v228 = vadd.f32 0.0, %v227
    %v229 = vpop.f32.mrf.mxu0
    %v230 = vpop.f32.mrf.mxu0
    %v231 = vadd.f32 0.0, %v230
    %v232 = vpop.f32.mrf.mxu0
    %233 = vmatprep.mubr.bf16.mxu0 0
    %234 = vmatmul.mubr.bf16.gmra.mxu0 %v105
    %v235 = vpop.f32.mrf.mxu0
    %v236 = vadd.f32 0.0, %v235
    %v237 = vpop.f32.mrf.mxu0
    %v238 = vpop.f32.mrf.mxu0
    %v239 = vadd.f32 0.0, %v238
    %v240 = vpop.f32.mrf.mxu0
    %241 = vdwg.mxu0
    %v242 = vpack.c.bf16 %v231, %v228
    %v243 = vpack.c.bf16 %v239, %v236
    %v246 = vunpack.c.l.b16 %v242
    %v247 = vunpack.c.h.b16 %v242
    %v248 = vunpack.c.l.b16 %v243
    %v249 = vunpack.c.h.b16 %v243
    %v250 = vpack.c.b16 %v246, %v246
    %v251 = vpack.c.b16 %v247, %v247
    %v252 = vpack.c.b16 %v248, %v248
    %v253 = vpack.c.b16 %v249, %v249
    %258 = vst.msk [vmem:[#allocation11] sm:$0xf] %vm172, %v250
    %259 = vst.msk [vmem:[#allocation11 + $0x4] sm:$0xf] %vm172, %v251
    %260 = vst.msk [vmem:[#allocation11 + $0x8] sm:$0xf] %vm172, %v252
    %261 = vst.msk [vmem:[#allocation11 + $0xc] sm:$0xf] %vm172, %v253
    %v262 = vld [vmem:[#allocation8] sm:$0xf]
    %v263 = vld [vmem:[#allocation8 + $0x4] sm:$0xf]
    %v264 = vld [vmem:[#allocation8 + $0x8] sm:$0xf]
    %v265 = vld [vmem:[#allocation8 + $0xc] sm:$0xf]
    %v270 = vunpack.c.l.b16 %v262
    %v271 = vunpack.c.l.b16 %v263
    %v272 = vunpack.c.l.b16 %v264
    %v273 = vunpack.c.l.b16 %v265
    %v274 = vpack.c.b16 %v271, %v270
    %v275 = vpack.c.b16 %v273, %v272
    %278 = vmatprep.subr.bf16.mxu0 0
    %279 = vmatpush1.bf16.msra.mxu0 0
    %280 = vmatprep.subr.bf16.mxu0 0
    %281 = vmatpush1.bf16.msra.mxu0 0
    %282 = vmatprep.subr.bf16.mxu0 0
    %283 = vmatpush1.bf16.msra.mxu0 0
    %284 = vmatprep.subr.bf16.mxu0 0
    %285 = vmatpush1.bf16.msra.mxu0 0
    %286 = vmatprep.subr.bf16.mxu0 0
    %287 = vmatpush1.bf16.msra.mxu0 0
    %288 = vmatprep.subr.bf16.mxu0 0
    %289 = vmatpush1.bf16.msra.mxu0 0
    %290 = vmatprep.subr.bf16.mxu0 0
    %291 = vmatpush1.bf16.msra.mxu0 %v275
    %292 = vmatprep.subr.bf16.mxu0 0
    %293 = vmatpush1.bf16.msra.mxu0 %v274
    %294 = vmatprep.subr.bf16.mxu0 0
    %295 = vmatpush2.bf16.msra.mxu0 0
    %296 = vmatprep.subr.bf16.mxu0 0
    %297 = vmatpush2.bf16.msra.mxu0 0
    %298 = vmatprep.subr.bf16.mxu0 0
    %299 = vmatpush2.bf16.msra.mxu0 0
    %300 = vmatprep.subr.bf16.mxu0 0
    %301 = vmatpush2.bf16.msra.mxu0 0
    %302 = vmatprep.subr.bf16.mxu0 0
    %303 = vmatpush2.bf16.msra.mxu0 0
    %304 = vmatprep.subr.bf16.mxu0 0
    %305 = vmatpush2.bf16.msra.mxu0 0
    %306 = vmatprep.subr.bf16.mxu0 0
    %307 = vmatpush2.bf16.msra.mxu0 0
    %308 = vmatprep.subr.bf16.mxu0 0
    %309 = vmatpush2.bf16.msra.mxu0 0
    %310 = vmatprep.mubr.bf16.mxu0 0
    %311 = vmatmul.mubr.bf16.gmra.mxu0 %v102
    %v312 = vpop.f32.mrf.mxu0
    %v313 = vadd.f32 0.0, %v312
    %v314 = vpop.f32.mrf.mxu0
    %v315 = vpop.f32.mrf.mxu0
    %v316 = vadd.f32 0.0, %v315
    %v317 = vpop.f32.mrf.mxu0
    %318 = vmatprep.mubr.bf16.mxu0 0
    %319 = vmatmul.mubr.bf16.gmra.mxu0 %v105
    %v320 = vpop.f32.mrf.mxu0
    %v321 = vadd.f32 0.0, %v320
    %v322 = vpop.f32.mrf.mxu0
    %v323 = vpop.f32.mrf.mxu0
    %v324 = vadd.f32 0.0, %v323
    %v325 = vpop.f32.mrf.mxu0
    %326 = vdwg.mxu0
    %v327 = vpack.c.bf16 %v316, %v313
    %v328 = vpack.c.bf16 %v324, %v321
    %v331 = vunpack.c.l.b16 %v327
    %v332 = vunpack.c.h.b16 %v327
    %v333 = vunpack.c.l.b16 %v328
    %v334 = vunpack.c.h.b16 %v328
    %v335 = vpack.c.b16 %v331, %v331
    %v336 = vpack.c.b16 %v332, %v332
    %v337 = vpack.c.b16 %v333, %v333
    %v338 = vpack.c.b16 %v334, %v334
    %343 = vst.msk [vmem:[#allocation13] sm:$0xf] %vm172, %v335
    %344 = vst.msk [vmem:[#allocation13 + $0x4] sm:$0xf] %vm172, %v336
    %345 = vst.msk [vmem:[#allocation13 + $0x8] sm:$0xf] %vm172, %v337
    %346 = vst.msk [vmem:[#allocation13 + $0xc] sm:$0xf] %vm172, %v338
    // Predicated region
    $region34: #{tpu_custom_call.1} parent=1 // pred_check
      _
    $region35: #{tpu_custom_call.1} parent=1 // pred_check_branch
      %348 = sbr.rel (0) target = $region37
    $region36: #{tpu_custom_call.1} parent=1 // pred_region
      %s350 = ssub.s32 256, 256
      %351 = vsyncadd [#allocation4], %s350
      %s352 = sshll.u32 [#allocation10], 4
      %s353 = int_to_ptr.vmem [resolvable:$true] %s352
      %358 = dma.vmem_to_hbm [thread:$0]  %s353, 256, %s4, [#allocation4], 64, 64, 4
    $region37: #{tpu_custom_call.1} parent=1 // pred_fallthru
      _
    // Predicated region
    $region38: #{tpu_custom_call.1} parent=1 // pred_check
      _
    $region39: #{tpu_custom_call.1} parent=1 // pred_check_branch
      %360 = sbr.rel (0) target = $region41
    $region40: #{tpu_custom_call.1} parent=1 // pred_region
      %s362 = ssub.s32 256, 256
      %363 = vsyncadd [#allocation12], %s362
      %s364 = sshll.u32 [#allocation11], 4
      %s365 = int_to_ptr.vmem [resolvable:$true] %s364
      %370 = dma.vmem_to_hbm [thread:$0]  %s365, 256, %s5, [#allocation12], 64, 64, 4
    $region41: #{tpu_custom_call.1} parent=1 // pred_fallthru
      _
    // Predicated region
    $region42: #{tpu_custom_call.1} parent=1 // pred_check
      _
    $region43: #{tpu_custom_call.1} parent=1 // pred_check_branch
      %372 = sbr.rel (0) target = $region45
    $region44: #{tpu_custom_call.1} parent=1 // pred_region
      %s374 = ssub.s32 256, 256
      %375 = vsyncadd [#allocation12], %s374
      %s376 = sshll.u32 [#allocation13], 4
      %s377 = int_to_ptr.vmem [resolvable:$true] %s376
      %382 = dma.vmem_to_hbm [thread:$0]  %s377, 256, %s6, [#allocation12], 64, 64, 4
    $region45: #{tpu_custom_call.1} parent=1 // pred_fallthru
      _
    // Predicated region
    $region46: #{tpu_custom_call.1} parent=1 // pred_check
      _
    $region47: #{tpu_custom_call.1} parent=1 // pred_check_branch
      %384 = sbr.rel (0) target = $region49
    $region48: #{tpu_custom_call.1} parent=1 // pred_region
      %385 = dma.done [#allocation4], 256
    $region49: #{tpu_custom_call.1} parent=1 // pred_fallthru
      _
    // Predicated region
    $region50: #{tpu_custom_call.1} parent=1 // pred_check
      _
    $region51: #{tpu_custom_call.1} parent=1 // pred_check_branch
      %387 = sbr.rel (0) target = $region53
    $region52: #{tpu_custom_call.1} parent=1 // pred_region
      %388 = dma.done [#allocation12], 256
    $region53: #{tpu_custom_call.1} parent=1 // pred_fallthru
      _
    // Predicated region
    $region54: #{tpu_custom_call.1} parent=1 // pred_check
      _
    $region55: #{tpu_custom_call.1} parent=1 // pred_check_branch
      %390 = sbr.rel (0) target = $region57
    $region56: #{tpu_custom_call.1} parent=1 // pred_region
      %391 = dma.done [#allocation12], 256
    $region57: #{tpu_custom_call.1} parent=1 // pred_fallthru
      _
    %392 = vsyncpa [#allocation3], 1
    %393 = vsyncpa [#allocation6], 1
    %394 = vsyncpa [#allocation9], 1
    %395 = vsyncpa [#allocation4], 1
    %396 = vsyncpa [#allocation12], 1

</llo_original>
